<compile_context>
chip_gen: v6e
topology: v6e:2x2x1
jax: 0.10.0
libtpu: 0.0.40
codegen_flags: <defaults>
</compile_context>

<pallas_src>
import functools

import jax
import jax.numpy as jnp
from jax import lax
from jax.experimental import pallas as pl
from jax.experimental.pallas import tpu as pltpu

_NEG_LARGE = -1e30  # inert under max / exp, produces no NaNs.


def _round_up(x, m):
    return ((x + m - 1) // m) * m


def _ce_kernel(scores_ref, tgt_ref, out_ref, m_ref, l_ref, *, n_valid, c_valid):
    # scores_ref: (TILE_N, TILE_C) logits tile (input dtype, cast to f32 here)
    # tgt_ref:    (TILE_N, 1) f32 target logit per row (gathered outside)
    # out_ref:    (1, 8, 128) f32 lane-dense per-batch-block partial sum
    # m_ref/l_ref:(TILE_N, 1) f32 running max / running sum-of-exp
    i = pl.program_id(0)
    j = pl.program_id(1)
    n_c_blocks = pl.num_programs(1)
    tile_n, tile_c = scores_ref.shape

    @pl.when(j == 0)
    def _():
        m_ref[...] = jnp.full_like(m_ref, _NEG_LARGE)
        l_ref[...] = jnp.zeros_like(l_ref)

    s = scores_ref[...].astype(jnp.float32)  # (TILE_N, TILE_C)

    # Mask the ragged class tail (static no-op when C divides evenly / when
    # the class axis is a single full-width block).  Block-local iota compared
    # against a scalar limit keeps this to 3 VALU ops/element.
    if c_valid % tile_c != 0:
        col = lax.broadcasted_iota(jnp.int32, s.shape, 1)
        s = jnp.where(col < c_valid - j * tile_c, s, _NEG_LARGE)

    # ---- online log-sum-exp over the class axis (VPU + EUP + XLU) ----------
    m_prev = m_ref[...]
    m_new = jnp.maximum(m_prev, jnp.max(s, axis=-1, keepdims=True))
    l_ref[...] = (l_ref[...] * jnp.exp(m_prev - m_new)
                  + jnp.sum(jnp.exp(s - m_new), axis=-1, keepdims=True))
    m_ref[...] = m_new

    # ---- finalize on the last class block -----------------------------------
    @pl.when(j == n_c_blocks - 1)
    def _():
        per_example = m_ref[...] + jnp.log(l_ref[...]) - tgt_ref[...]  # (TILE_N, 1)
        if n_valid % tile_n != 0:
            # Drop batch-padding rows (their data is undefined; jnp.where also
            # squashes any NaN they produced).
            row = lax.broadcasted_iota(jnp.int32, per_example.shape, 0)
            per_example = jnp.where(row < n_valid - i * tile_n, per_example, 0.0)
        out_ref[...] = jnp.full(out_ref.shape, jnp.sum(per_example), jnp.float32)


def crossentropy_loss(scores, ans, *, tile_n=512, tile_c=4096):
    """Pallas equivalent of LogSoftmax(dim=1) + NLLLoss(mean) on (scores, ans)."""
    n, c = scores.shape
    labels = ans.reshape(n).astype(jnp.int32)   # ans.view(ans.shape[0])

    # Target logit per row, gathered once (reads only N elements).
    tgt = jnp.take_along_axis(scores, labels[:, None], axis=1).astype(jnp.float32)

    sublane = 16 if scores.dtype == jnp.bfloat16 else 8

    # Batch tiling: full-dim block for tiny N, otherwise a sublane-aligned
    # tile chosen so the "parallel" axis has >= 2 blocks (v7x has 2 TCs).
    if n < 2 * sublane:
        tile_n = n
    else:
        tile_n = min(_round_up(tile_n, sublane),
                     _round_up(pl.cdiv(n, 2), sublane))

    # Class tiling: single full-width block when it fits the VMEM budget,
    # otherwise a 128-aligned strip (ragged tail masked in-kernel).
    if c <= tile_c:
        tile_c = c
    else:
        tile_c = _round_up(tile_c, 128)

    n_n_blocks = pl.cdiv(n, tile_n)
    n_c_blocks = pl.cdiv(c, tile_c)

    kernel = functools.partial(_ce_kernel, n_valid=n, c_valid=c)

    partials = pl.pallas_call(
        kernel,
        out_shape=jax.ShapeDtypeStruct((n_n_blocks, 8, 128), jnp.float32),
        grid_spec=pltpu.PrefetchScalarGridSpec(
            num_scalar_prefetch=0,
            grid=(n_n_blocks, n_c_blocks),
            in_specs=[
                pl.BlockSpec((tile_n, tile_c), lambda i, j: (i, j)),
                pl.BlockSpec((tile_n, 1), lambda i, j: (i, 0)),
            ],
            out_specs=pl.BlockSpec((1, 8, 128), lambda i, j: (i, 0, 0)),
            scratch_shapes=[
                pltpu.VMEM((tile_n, 1), jnp.float32),  # running max
                pltpu.VMEM((tile_n, 1), jnp.float32),  # running sum of exp
            ],
        ),
        compiler_params=pltpu.CompilerParams(
            dimension_semantics=("parallel", "arbitrary"),
            # Sized for v7x's 64 MiB VMEM (2x double-buffered scores block +
            # the in-kernel f32 cast temp + small inputs/scratch << 48 MiB);
            # also raises v5e's 16 MiB scoped default.
            vmem_limit_bytes=48 * 1024 * 1024,
        ),
    )(scores, tgt)

    # Tiny final reduction outside the kernel; multiply by precomputed 1/N.
    return jnp.sum(partials[:, 0, 0]) * jnp.float32(1.0 / n)


def _reference(scores, ans):
    n = scores.shape[0]
    logp = jax.nn.log_softmax(scores.astype(jnp.float32), axis=-1)
    return jnp.mean(-jnp.take_along_axis(logp, ans.reshape(n, 1), axis=-1))


if __name__ == "__main__":
    key = jax.random.PRNGKey(0)
    k1, k2, k3, k4, k5, k6 = jax.random.split(key, 6)

    # Case 1: small shapes matching the module convention (batch=8, classes=32).
    N, C = 8, 32
    scores = jax.random.normal(k1, (N, C), dtype=jnp.float32)
    ans = jax.random.randint(k2, (N, 1), 0, C, dtype=jnp.int32)
    loss = crossentropy_loss(scores, ans)
    jax.block_until_ready(loss)
    assert jnp.allclose(loss, _reference(scores, ans), atol=1e-5, rtol=1e-5), loss

    # Case 2: ragged N and C with small tiles to exercise the 2-D grid,
    # online-LSE accumulation and in-kernel tail masking (no padding).
    N2, C2 = 20, 200
    scores2 = jax.random.normal(k3, (N2, C2), dtype=jnp.float32)
    ans2 = jax.random.randint(k4, (N2,), 0, C2, dtype=jnp.int32)
    loss2 = crossentropy_loss(scores2, ans2, tile_n=8, tile_c=128)
    jax.block_until_ready(loss2)
    assert jnp.allclose(loss2, _reference(scores2, ans2), atol=1e-5, rtol=1e-5), loss2

    # Case 3: bf16 logits, multiple batch + class blocks with ragged tails.
    N3, C3 = 48, 384
    scores3 = jax.random.normal(k5, (N3, C3), dtype=jnp.float32).astype(jnp.bfloat16)
    ans3 = jax.random.randint(k6, (N3,), 0, C3, dtype=jnp.int32)
    loss3 = crossentropy_loss(scores3, ans3, tile_c=256)
    jax.block_until_ready(loss3)
    assert jnp.allclose(loss3, _reference(scores3, ans3), atol=1e-4, rtol=1e-4), loss3

    print("KERNEL_OK")
</pallas_src>

<mosaic_0001>
module attributes {stable_mosaic.version = 11 : i64} {
  func.func @_ce_kernel(%arg0: i32, %arg1: i32, %arg2: memref<8x32xf32, #tpu.memory_space<vmem>>, %arg3: memref<8x1xf32, #tpu.memory_space<vmem>>, %arg4: memref<1x8x128xf32, #tpu.memory_space<vmem>>, %arg5: memref<8x1xf32, #tpu.memory_space<vmem>>, %arg6: memref<8x1xf32, #tpu.memory_space<vmem>>) attributes {dimension_semantics = [#tpu.dimension_semantics<parallel>, #tpu.dimension_semantics<arbitrary>], iteration_bounds = array<i64: 1, 1>, scalar_prefetch = 0 : i64, scratch_operands = 2 : i64, tpu.core_type = #tpu.core_type<tc>, window_params = [{transform_indices = @transform_0, window_bounds = array<i64: 8, 32>}, {transform_indices = @transform_1, window_bounds = array<i64: 8, 1>}, {transform_indices = @transform_2, window_bounds = array<i64: 1, 8, 128>}]} {
    %c0_i32 = arith.constant 0 : i32
    %0 = arith.cmpi eq, %arg1, %c0_i32 : i32
    %1 = arith.extui %0 : i1 to i32
    %c0_i32_0 = arith.constant 0 : i32
    %2 = arith.cmpi ne, %1, %c0_i32_0 : i32
    scf.if %2 {
      %cst_13 = arith.constant -1.000000e+30 : f32
      %23 = vector.broadcast %cst_13 : f32 to vector<8x1xf32>
      %c0_14 = arith.constant 0 : index
      %c0_15 = arith.constant 0 : index
      %24 = vector.load %arg5[%c0_14, %c0_15] : memref<8x1xf32, #tpu.memory_space<vmem>>, vector<8x1xf32>
      tpu.vector_store %arg5[%c0_14, %c0_15], %23 {strides = array<i32>} : memref<8x1xf32, #tpu.memory_space<vmem>>, vector<8x1xf32>,
      %cst_16 = arith.constant 0.000000e+00 : f32
      %25 = vector.broadcast %cst_16 : f32 to vector<8x1xf32>
      %c0_17 = arith.constant 0 : index
      %c0_18 = arith.constant 0 : index
      %26 = vector.load %arg6[%c0_17, %c0_18] : memref<8x1xf32, #tpu.memory_space<vmem>>, vector<8x1xf32>
      tpu.vector_store %arg6[%c0_17, %c0_18], %25 {strides = array<i32>} : memref<8x1xf32, #tpu.memory_space<vmem>>, vector<8x1xf32>,
    } else {
    }
    %c0 = arith.constant 0 : index
    %c0_1 = arith.constant 0 : index
    %3 = vector.load %arg2[%c0, %c0_1] : memref<8x32xf32, #tpu.memory_space<vmem>>, vector<8x32xf32>
    %c0_2 = arith.constant 0 : index
    %c0_3 = arith.constant 0 : index
    %4 = vector.load %arg5[%c0_2, %c0_3] : memref<8x1xf32, #tpu.memory_space<vmem>>, vector<8x1xf32>
    %cst = arith.constant dense<0xFF800000> : vector<8xf32>
    %5 = vector.multi_reduction <maximumf>, %3, %cst [1] : vector<8x32xf32> to vector<8xf32>
    %6 = vector.shape_cast %5 : vector<8xf32> to vector<8x1xf32>
    %7 = arith.maximumf %4, %6 : vector<8x1xf32>
    %c0_4 = arith.constant 0 : index
    %c0_5 = arith.constant 0 : index
    %8 = vector.load %arg6[%c0_4, %c0_5] : memref<8x1xf32, #tpu.memory_space<vmem>>, vector<8x1xf32>
    %9 = arith.subf %4, %7 : vector<8x1xf32>
    %10 = math.exp %9 : vector<8x1xf32>
    %11 = arith.mulf %8, %10 : vector<8x1xf32>
    %12 = vector.broadcast %7 : vector<8x1xf32> to vector<8x32xf32>
    %13 = arith.subf %3, %12 : vector<8x32xf32>
    %14 = math.exp %13 : vector<8x32xf32>
    %cst_6 = arith.constant dense<0.000000e+00> : vector<8xf32>
    %15 = vector.multi_reduction <add>, %14, %cst_6 [1] : vector<8x32xf32> to vector<8xf32>
    %16 = vector.shape_cast %15 : vector<8xf32> to vector<8x1xf32>
    %17 = arith.addf %11, %16 : vector<8x1xf32>
    %c0_7 = arith.constant 0 : index
    %c0_8 = arith.constant 0 : index
    %18 = vector.load %arg6[%c0_7, %c0_8] : memref<8x1xf32, #tpu.memory_space<vmem>>, vector<8x1xf32>
    tpu.vector_store %arg6[%c0_7, %c0_8], %17 {strides = array<i32>} : memref<8x1xf32, #tpu.memory_space<vmem>>, vector<8x1xf32>,
    %c0_9 = arith.constant 0 : index
    %c0_10 = arith.constant 0 : index
    %19 = vector.load %arg5[%c0_9, %c0_10] : memref<8x1xf32, #tpu.memory_space<vmem>>, vector<8x1xf32>
    tpu.vector_store %arg5[%c0_9, %c0_10], %7 {strides = array<i32>} : memref<8x1xf32, #tpu.memory_space<vmem>>, vector<8x1xf32>,
    %c0_i32_11 = arith.constant 0 : i32
    %20 = arith.cmpi eq, %arg1, %c0_i32_11 : i32
    %21 = arith.extui %20 : i1 to i32
    %c0_i32_12 = arith.constant 0 : i32
    %22 = arith.cmpi ne, %21, %c0_i32_12 : i32
    scf.if %22 {
      %c0_13 = arith.constant 0 : index
      %c0_14 = arith.constant 0 : index
      %23 = vector.load %arg5[%c0_13, %c0_14] : memref<8x1xf32, #tpu.memory_space<vmem>>, vector<8x1xf32>
      %c0_15 = arith.constant 0 : index
      %c0_16 = arith.constant 0 : index
      %24 = vector.load %arg6[%c0_15, %c0_16] : memref<8x1xf32, #tpu.memory_space<vmem>>, vector<8x1xf32>
      %25 = math.log %24 : vector<8x1xf32>
      %26 = arith.addf %23, %25 : vector<8x1xf32>
      %c0_17 = arith.constant 0 : index
      %c0_18 = arith.constant 0 : index
      %27 = vector.load %arg3[%c0_17, %c0_18] : memref<8x1xf32, #tpu.memory_space<vmem>>, vector<8x1xf32>
      %28 = arith.subf %26, %27 : vector<8x1xf32>
      %29 = vector.shape_cast %28 : vector<8x1xf32> to vector<1x8x1xf32>
      %cst_19 = arith.constant dense<0.000000e+00> : vector<1xf32>
      %30 = vector.multi_reduction <add>, %29, %cst_19 [1, 2] : vector<1x8x1xf32> to vector<1xf32>
      %31 = vector.shape_cast %30 : vector<1xf32> to vector<1x1x1xf32>
      %32 = vector.extract %31[0, 0, 0] : f32 from vector<1x1x1xf32>
      %33 = vector.broadcast %32 : f32 to vector<1x8x128xf32>
      %c0_20 = arith.constant 0 : index
      %c0_21 = arith.constant 0 : index
      %c0_22 = arith.constant 0 : index
      %34 = vector.load %arg4[%c0_20, %c0_21, %c0_22] : memref<1x8x128xf32, #tpu.memory_space<vmem>>, vector<1x8x128xf32>
      tpu.vector_store %arg4[%c0_20, %c0_21, %c0_22], %33 {strides = array<i32>} : memref<1x8x128xf32, #tpu.memory_space<vmem>>, vector<1x8x128xf32>,
    } else {
    }
    return
  }
  func.func @transform_0(%arg0: i32, %arg1: i32) -> (i32, i32) {
    %c0_i32 = arith.constant 0 : i32
    return %arg0, %arg1 : i32, i32
  }
  func.func @transform_1(%arg0: i32, %arg1: i32) -> (i32, i32) {
    %c0_i32 = arith.constant 0 : i32
    %c0_i32_0 = arith.constant 0 : i32
    return %arg0, %c0_i32 : i32, i32
  }
  func.func @transform_2(%arg0: i32, %arg1: i32) -> (i32, i32, i32) {
    %c0_i32 = arith.constant 0 : i32
    %c0_i32_0 = arith.constant 0 : i32
    %c0_i32_1 = arith.constant 0 : i32
    return %arg0, %c0_i32, %c0_i32_0 : i32, i32, i32
  }
}

</mosaic_0001>

<llo_original>
// kernel: tpu_custom_call.1
$region0: #{tpu_custom_call.1}
  #allocation0 [shape = 'u32[]', space=smem, size = 0x4, offset = 0x4, fixed_abs, tag = 'smem constant byte address 0x4 - core index']
  #allocation1 [shape = 'u32[144,128]{1,0:T(1,128)}', space=vmem, size = 0x12000, scoped, tag = 'internal scratch']
  #allocation2 [shape = 'f32[8,1]{1,0:T(8,128)}', space=vmem, size = 0x1000, scoped, tag = 'scratch operand']
  #allocation3 [shape = 'f32[8,1]{1,0:T(8,128)}', space=vmem, size = 0x1000, scoped, tag = 'scratch operand']
  %s0 = inlined_call_operand.vmem [shape: f32[8,32], index: 0, kind: input, shape index: {}]
  %s1 = inlined_call_operand.vmem [shape: f32[8,1], index: 1, kind: input, shape index: {}]
  %s2 = inlined_call_operand.hbm [shape: f32[1,8,128], index: 2, kind: output, shape index: {}]
  %s3 = sld [smem:[#allocation0]]
  $region26: #{tpu_custom_call.1} parent=0
    _
  %s5 = ssub.s32 1, %s3
  %s6 = scalar_select 0, %s5, %s3
  $region1: #{tpu_custom_call.1} parent=0
    #allocation4 [shape = 'u8[4096]{0}', space=vmem, size = 0x1000, scoped, tag = 'output window, operand 0, single buffered']
    #allocation5 [shape = 's32[1]{0}', space=sflag, size = 0x4, scoped, tag = 'scoped memory for tpu_custom_call.1']
    %7 = vsyncpa [#allocation5], 0
    // Predicated region
    $region2: #{tpu_custom_call.1} parent=1 // pred_check
      _
    $region3: #{tpu_custom_call.1} parent=1 // pred_check_branch
      %9 = sbr.rel (0) target = $region5
    $region4: #{tpu_custom_call.1} parent=1 // pred_region
      _
    $region5: #{tpu_custom_call.1} parent=1 // pred_fallthru
      _
    // Predicated region
    $region6: #{tpu_custom_call.1} parent=1 // pred_check
      _
    $region7: #{tpu_custom_call.1} parent=1 // pred_check_branch
      %11 = sbr.rel (0) target = $region9
    $region8: #{tpu_custom_call.1} parent=1 // pred_region
      _
    $region9: #{tpu_custom_call.1} parent=1 // pred_fallthru
      _
    %p12 = scmp.eq.s32.totalorder 0, 0
    // Predicated region
    $region10: #{tpu_custom_call.1} parent=1 // pred_check
      %p13 = pneg %p12
    $region11: #{tpu_custom_call.1} parent=1 // pred_check_branch
      %15 = sbr.rel (%p13) target = $region13
    $region12: #{tpu_custom_call.1} parent=1 // pred_region
      %vm16 = vcmask 7168
      %17 = vst.msk [vmem:[#allocation2] sm:$0xff] %vm16, -1e+30
      %18 = vst.msk [vmem:[#allocation3] sm:$0xff] %vm16, 0.0
    $region13: #{tpu_custom_call.1} parent=1 // pred_fallthru
      _
    %v19 = vld [vmem:[%s0] sm:$0xff]
    %v20 = vld [vmem:[#allocation2] sm:$0xff]
    %vm21 = vcmask 261120
    %v22 = vsel %vm21, %v19, -inf
    %23 = vmax.xlane.f32.xlu0 %v22
    %v24 = vpop.xlane.xlu0 %23
    %v25 = vmax.f32 %v20, %v24
    %v26 = vld [vmem:[#allocation3] sm:$0xff]
    %v27 = vsub.f32 %v20, %v25
    %v28 = vmul.f32 %v27, 1.442695
    %v29 = vpow.pop %v28
    %v30 = vmul.f32 %v26, %v29
    %32 = vset.pattern.permute.xlu0 0
    %33 = vperm.xlu0 %32, %v25
    %v34 = vpop.permute.xlu0 %33
    %v36 = vsub.f32 %v19, %v34
    %v37 = vmul.f32 %v36, 1.442695
    %v38 = vpow.pop %v37
    %v39 = vsel %vm21, %v38, 0.0
    %40 = vadd.xlane.f32.xlu0 %v39
    %v41 = vpop.xlane.xlu0 %40
    %v42 = vadd.f32 %v30, %v41
    %vm43 = vcmask 7168
    %44 = vst.msk [vmem:[#allocation3] sm:$0xff] %vm43, %v42
    %45 = vst.msk [vmem:[#allocation2] sm:$0xff] %vm43, %v25
    // Predicated region
    $region14: #{tpu_custom_call.1} parent=1 // pred_check
      %p46 = pneg %p12
    $region15: #{tpu_custom_call.1} parent=1 // pred_check_branch
      %48 = sbr.rel (%p46) target = $region17
    $region16: #{tpu_custom_call.1} parent=1 // pred_region
      %v49 = vld [vmem:[#allocation2] sm:$0xff]
      %v50 = vld [vmem:[#allocation3] sm:$0xff]
      %v51 = vlog2.pop %v50
      %v52 = vmul.f32 %v51, 0.6931472
      %v53 = vadd.f32 %v49, %v52
      %v54 = vld [vmem:[%s1] sm:$0xff]
      %v55 = vsub.f32 %v53, %v54
      %v56 = vsel %vm43, %v55, 0.0
      %57 = vadd.xlane.f32.xlu0 %v56
      %v58 = vpop.xlane.xlu0 %57
      %v59 = vrot.slane %v58, 4
      %v60 = vadd.f32 %v58, %v59
      %v61 = vrot.slane %v60, 2
      %v62 = vadd.f32 %v60, %v61
      %v63 = vrot.slane %v62, 1
      %v64 = vadd.f32 %v62, %v63
      %s65 = vtos %v64
      %v66 = vstv %s65
      %67 = vst [vmem:[#allocation4] sm:$0xff] %v66
    $region17: #{tpu_custom_call.1} parent=1 // pred_fallthru
      _
    // Predicated region
    $region18: #{tpu_custom_call.1} parent=1 // pred_check
      _
    $region19: #{tpu_custom_call.1} parent=1 // pred_check_branch
      %69 = sbr.rel (0) target = $region21
    $region20: #{tpu_custom_call.1} parent=1 // pred_region
      %s71 = ssub.s32 128, 128
      %72 = vsyncadd [#allocation5], %s71
      %s74 = sshll.u32 [#allocation4], 4
      %s75 = int_to_ptr.vmem [resolvable:$true] %s74
      %77 = dma.vmem_to_hbm [thread:$0]  %s75, 128, %s2, [#allocation5]
    $region21: #{tpu_custom_call.1} parent=1 // pred_fallthru
      _
    // Predicated region
    $region22: #{tpu_custom_call.1} parent=1 // pred_check
      _
    $region23: #{tpu_custom_call.1} parent=1 // pred_check_branch
      %79 = sbr.rel (0) target = $region25
    $region24: #{tpu_custom_call.1} parent=1 // pred_region
      %80 = dma.done [#allocation5], 128
    $region25: #{tpu_custom_call.1} parent=1 // pred_fallthru
      _
    %81 = vsyncpa [#allocation5], 1

</llo_original>
